<compile_context>
chip_gen: v7x
topology: tpu7x:2x2x1
jax: 0.10.0
libtpu: 0.0.40
codegen_flags: <defaults>
</compile_context>

<pallas_src>
import jax
import jax.numpy as jnp
from jax.experimental import pallas as pl
from jax.experimental.pallas import tpu as pltpu


# -----------------------------------------------------------------------------
# Pallas kernel: conv3x3 -> BN -> LeakyReLU -> conv3x3 -> BN -> LeakyReLU
# -----------------------------------------------------------------------------
def _conv_block_kernel(x_ref, w1_ref, w2_ref, sb_ref, o_ref, xv_ref, yv_ref):
    # x_ref : (Bt, H, W*Cin)       NHWC with W folded onto lanes, bf16, unpadded
    # w1_ref: (3, W*Cin,  W*Cout)  banded conv1 weights (h-reflect folded), bf16
    # w2_ref: (3, W*Cout, W*Cout)  banded conv2 weights (h-reflect folded), bf16
    # sb_ref: (4, W*Cout)          rows = [scale1, shift1, scale2, shift2], f32
    # o_ref : (Bt, H, W*Cout)      lane-dense NHWC output, bf16
    # xv_ref: (Bt, H+2, W*Cin)     VMEM scratch: vertically reflect-padded input
    # yv_ref: (Bt, H+2, W*Cout)    VMEM scratch: vertically reflect-padded stage-1 act
    bt, h, wcin = x_ref.shape
    wc = o_ref.shape[-1]

    # --- vertical reflect pad of the input via ref copies (address arithmetic,
    #     no value-level sublane rotates / concats) ----------------------------
    xv_ref[:, 1:h + 1, :] = x_ref[...]
    xv_ref[:, 0, :] = xv_ref[:, 2, :]              # row -1 -> row 1
    xv_ref[:, h + 1, :] = xv_ref[:, h - 1, :]      # row  H -> row H-2

    # --- stage 1: 3 MXU matmuls, M = Bt*H, K = W*Cin, N = W*Cout ---------------
    acc1 = jnp.zeros((bt * h, wc), jnp.float32)
    for dy in range(3):                            # static unroll
        lhs = xv_ref[:, dy:dy + h, :].reshape(bt * h, wcin)
        acc1 = acc1 + jnp.dot(lhs, w1_ref[dy], preferred_element_type=jnp.float32)
    y1 = acc1 * sb_ref[0] + sb_ref[1]              # folded BatchNorm
    y1 = jnp.where(y1 >= 0.0, y1, 0.01 * y1)       # LeakyReLU(0.01); Dropout2d = id (eval)

    # stage-1 activation stays on-chip: write + vertical reflect pad in scratch
    yv_ref[:, 1:h + 1, :] = y1.astype(jnp.bfloat16).reshape(bt, h, wc)
    yv_ref[:, 0, :] = yv_ref[:, 2, :]
    yv_ref[:, h + 1, :] = yv_ref[:, h - 1, :]

    # --- stage 2: 3 MXU matmuls, M = Bt*H, K = W*Cout, N = W*Cout --------------
    acc2 = jnp.zeros((bt * h, wc), jnp.float32)
    for dy in range(3):
        lhs = yv_ref[:, dy:dy + h, :].reshape(bt * h, wc)
        acc2 = acc2 + jnp.dot(lhs, w2_ref[dy], preferred_element_type=jnp.float32)
    y2 = acc2 * sb_ref[2] + sb_ref[3]
    y2 = jnp.where(y2 >= 0.0, y2, 0.01 * y2)
    o_ref[...] = y2.reshape(bt, h, wc).astype(o_ref.dtype)


# -----------------------------------------------------------------------------
# One-time weight preparation (hoisted out of the forward path)
# -----------------------------------------------------------------------------
def _band_select(w_cols):
    """sel[dx, p, w] == 1 iff (reflect-padded) input column p feeds output w at tap dx."""
    dx = jnp.arange(3)[:, None, None]
    p = jnp.arange(w_cols)[None, :, None]
    w = jnp.arange(w_cols)[None, None, :]
    src = w + dx - 1                                         # unpadded source column
    src = jnp.where(src < 0, -src, src)                      # left reflect:  -1 -> 1
    src = jnp.where(src > w_cols - 1, 2 * (w_cols - 1) - src, src)  # right: W -> W-2
    return (p == src).astype(jnp.float32)


def make_banded_weight(w_oihw, w_cols):
    """(Cout, Cin, 3, 3) OIHW weight -> (3, W*Cin, W*Cout) banded matmul weights
    with the 3 horizontal taps and the horizontal reflect pad folded into K."""
    cout, cin = w_oihw.shape[0], w_oihw.shape[1]
    sel = _band_select(w_cols)                               # (3, W, W)
    m = jnp.einsum("xpw,oiyx->ypiwo", sel, w_oihw)           # (3, W, Cin, W, Cout)
    return m.reshape(3, w_cols * cin, w_cols * cout)


def fold_bn(gamma, beta, running_mean, running_var, eps=1e-5):
    scale = gamma / jnp.sqrt(running_var + eps)
    shift = beta - running_mean * scale
    return scale, shift


def prepare_conv_block(p, width):
    """Fold weights/BN once per parameter set + spatial width (inference fast path)."""
    w1 = make_banded_weight(p["w1_oihw"], width).astype(jnp.bfloat16)
    w2 = make_banded_weight(p["w2_oihw"], width).astype(jnp.bfloat16)
    sb = jnp.stack([jnp.tile(p["s1"], width), jnp.tile(p["sh1"], width),
                    jnp.tile(p["s2"], width), jnp.tile(p["sh2"], width)], axis=0)  # f32
    return {"w1": w1, "w2": w2, "sb": sb}


def _choose_batch_tile(n, h, target_rows=256):
    """Images per grid step: fill the MXU M dimension but keep grid length >= 2
    (and even-ish) so v7x's two TensorCores both get work."""
    bt = max(1, min(n, target_rows // max(h, 1)))
    if n >= 2:
        bt = min(bt, n // 2)
    while n % bt:
        bt -= 1
    return bt


# -----------------------------------------------------------------------------
# Forward (NHWC in, NHWC bf16 out — no layout passes around the kernel)
# -----------------------------------------------------------------------------
def conv_block_forward_nhwc(x_nhwc, prepped):
    n, h, w, cin = x_nhwc.shape
    assert h >= 2 and w >= 2, "reflect pad=1 needs H, W >= 2"
    wcin = w * cin
    wc = prepped["w1"].shape[2]
    cout = wc // w
    bt = _choose_batch_tile(n, h)

    x = x_nhwc.astype(jnp.bfloat16).reshape(n, h, wcin)      # free view of NHWC

    out = pl.pallas_call(
        _conv_block_kernel,
        out_shape=jax.ShapeDtypeStruct((n, h, wc), jnp.bfloat16),
        grid=(n // bt,),
        in_specs=[
            pl.BlockSpec((bt, h, wcin), lambda i: (i, 0, 0)),
            # Grid-invariant operands (constant index_map). Default
            # double-buffering costs ~2x a few hundred KiB here -> negligible.
            pl.BlockSpec((3, wcin, wc), lambda i: (0, 0, 0)),
            pl.BlockSpec((3, wc, wc), lambda i: (0, 0, 0)),
            pl.BlockSpec((4, wc), lambda i: (0, 0)),
        ],
        out_specs=pl.BlockSpec((bt, h, wc), lambda i: (i, 0, 0)),
        scratch_shapes=[
            pltpu.VMEM((bt, h + 2, wcin), jnp.bfloat16),
            pltpu.VMEM((bt, h + 2, wc), jnp.bfloat16),
        ],
        compiler_params=pltpu.CompilerParams(
            dimension_semantics=("parallel",),    # batch axis across both TCs (v7x)
        ),
    )(x, prepped["w1"], prepped["w2"], prepped["sb"])

    return out.reshape(n, h, w, cout)             # free view back to NHWC


# -----------------------------------------------------------------------------
# Deterministic parameters + pure-JAX reference
# -----------------------------------------------------------------------------
def make_params(key, in_channel, out_channel):
    ks = jax.random.split(key, 8)
    p = {}
    p["w1_oihw"] = jax.random.normal(ks[0], (out_channel, in_channel, 3, 3), jnp.float32) * 0.1
    p["w2_oihw"] = jax.random.normal(ks[1], (out_channel, out_channel, 3, 3), jnp.float32) * 0.1
    g1 = 1.0 + 0.1 * jax.random.normal(ks[2], (out_channel,), jnp.float32)
    b1 = 0.1 * jax.random.normal(ks[3], (out_channel,), jnp.float32)
    m1 = 0.05 * jax.random.normal(ks[4], (out_channel,), jnp.float32)
    v1 = 1.0 + 0.1 * jnp.abs(jax.random.normal(ks[5], (out_channel,), jnp.float32))
    g2 = 1.0 + 0.1 * jax.random.normal(ks[6], (out_channel,), jnp.float32)
    b2 = 0.1 * jax.random.normal(ks[7], (out_channel,), jnp.float32)
    m2 = jnp.zeros((out_channel,), jnp.float32)
    v2 = jnp.ones((out_channel,), jnp.float32)
    p["s1"], p["sh1"] = fold_bn(g1, b1, m1, v1)
    p["s2"], p["sh2"] = fold_bn(g2, b2, m2, v2)
    return p


def conv_block_reference(x_nchw, p):
    """Pure-JAX reference (lax.conv, NCHW). Mirrors the kernel's bf16 matmul
    operands + f32 accumulation so the comparison stays tight."""
    def stage(x, w_oihw, scale, shift):
        xpad = jnp.pad(x, ((0, 0), (0, 0), (1, 1), (1, 1)), mode="reflect")
        y = jax.lax.conv_general_dilated(
            xpad.astype(jnp.bfloat16), w_oihw.astype(jnp.bfloat16),
            window_strides=(1, 1), padding="VALID",
            dimension_numbers=("NCHW", "OIHW", "NCHW"),
            preferred_element_type=jnp.float32)
        y = y * scale[None, :, None, None] + shift[None, :, None, None]
        return jnp.where(y >= 0.0, y, 0.01 * y)

    x = stage(x_nchw, p["w1_oihw"], p["s1"], p["sh1"])
    x = stage(x, p["w2_oihw"], p["s2"], p["sh2"])
    return x


if __name__ == "__main__":
    key = jax.random.PRNGKey(0)
    kx, kp = jax.random.split(key)

    N, Cin, Cout, H, W = 2, 4, 8, 16, 16
    x_nchw = jax.random.normal(kx, (N, Cin, H, W), jnp.float32)
    params = make_params(kp, Cin, Cout)

    prepped = prepare_conv_block(params, W)                    # one-time folding
    x_nhwc = jnp.transpose(x_nchw, (0, 2, 3, 1)).astype(jnp.bfloat16)

    fwd = jax.jit(conv_block_forward_nhwc)
    out_nhwc = jax.block_until_ready(fwd(x_nhwc, prepped))

    ref_nchw = jax.block_until_ready(conv_block_reference(x_nchw, params))
    out_nchw = jnp.transpose(out_nhwc.astype(jnp.float32), (0, 3, 1, 2))

    assert out_nchw.shape == (N, Cout, H, W), out_nchw.shape
    max_err = float(jnp.max(jnp.abs(out_nchw - ref_nchw)))
    # bf16 MXU operands through two convs + bf16 output vs f32 epilogue reference.
    assert jnp.allclose(out_nchw, ref_nchw, atol=3e-2, rtol=2e-2), max_err
    print("KERNEL_OK")
</pallas_src>

<mosaic_0001>
module attributes {stable_mosaic.version = 11 : i64} {
  func.func @_conv_block_kernel(%arg0: i32, %arg1: memref<1x16x64xbf16, #tpu.memory_space<vmem>>, %arg2: memref<3x64x128xbf16, #tpu.memory_space<vmem>>, %arg3: memref<3x128x128xbf16, #tpu.memory_space<vmem>>, %arg4: memref<4x128xf32, #tpu.memory_space<vmem>>, %arg5: memref<1x16x128xbf16, #tpu.memory_space<vmem>>, %arg6: memref<1x18x64xbf16, #tpu.memory_space<vmem>>, %arg7: memref<1x18x128xbf16, #tpu.memory_space<vmem>>) attributes {dimension_semantics = [#tpu.dimension_semantics<parallel>], iteration_bounds = array<i64: 2>, scalar_prefetch = 0 : i64, scratch_operands = 2 : i64, tpu.core_type = #tpu.core_type<tc>, window_params = [{transform_indices = @transform_0, window_bounds = array<i64: 1, 16, 64>}, {pipeline_mode = #tpu.pipeline_mode<synchronous>, transform_indices = @transform_1, window_bounds = array<i64: 3, 64, 128>}, {pipeline_mode = #tpu.pipeline_mode<synchronous>, transform_indices = @transform_2, window_bounds = array<i64: 3, 128, 128>}, {pipeline_mode = #tpu.pipeline_mode<synchronous>, transform_indices = @transform_3, window_bounds = array<i64: 4, 128>}, {transform_indices = @transform_4, window_bounds = array<i64: 1, 16, 128>}]} {
    %c0 = arith.constant 0 : index
    %c0_0 = arith.constant 0 : index
    %c0_1 = arith.constant 0 : index
    %0 = vector.load %arg1[%c0, %c0_0, %c0_1] : memref<1x16x64xbf16, #tpu.memory_space<vmem>>, vector<1x16x64xbf16>
    %c0_2 = arith.constant 0 : index
    %c1 = arith.constant 1 : index
    %c0_3 = arith.constant 0 : index
    %1 = vector.load %arg6[%c0_2, %c1, %c0_3] : memref<1x18x64xbf16, #tpu.memory_space<vmem>>, vector<1x16x64xbf16>
    tpu.vector_store %arg6[%c0_2, %c1, %c0_3], %0 {strides = array<i32>} : memref<1x18x64xbf16, #tpu.memory_space<vmem>>, vector<1x16x64xbf16>,
    %c0_4 = arith.constant 0 : index
    %c2 = arith.constant 2 : index
    %c0_5 = arith.constant 0 : index
    %2 = vector.load %arg6[%c0_4, %c2, %c0_5] : memref<1x18x64xbf16, #tpu.memory_space<vmem>>, vector<1x1x64xbf16>
    %3 = vector.shape_cast %2 : vector<1x1x64xbf16> to vector<1x64xbf16>
    %c0_6 = arith.constant 0 : index
    %c0_7 = arith.constant 0 : index
    %c0_8 = arith.constant 0 : index
    %4 = vector.load %arg6[%c0_6, %c0_7, %c0_8] : memref<1x18x64xbf16, #tpu.memory_space<vmem>>, vector<1x1x64xbf16>
    %5 = vector.shape_cast %4 : vector<1x1x64xbf16> to vector<1x64xbf16>
    %6 = vector.shape_cast %3 : vector<1x64xbf16> to vector<1x1x64xbf16>
    tpu.vector_store %arg6[%c0_6, %c0_7, %c0_8], %6 {strides = array<i32>} : memref<1x18x64xbf16, #tpu.memory_space<vmem>>, vector<1x1x64xbf16>,
    %c0_9 = arith.constant 0 : index
    %c15 = arith.constant 15 : index
    %c0_10 = arith.constant 0 : index
    %7 = vector.load %arg6[%c0_9, %c15, %c0_10] : memref<1x18x64xbf16, #tpu.memory_space<vmem>>, vector<1x1x64xbf16>
    %8 = vector.shape_cast %7 : vector<1x1x64xbf16> to vector<1x64xbf16>
    %c0_11 = arith.constant 0 : index
    %c17 = arith.constant 17 : index
    %c0_12 = arith.constant 0 : index
    %9 = vector.load %arg6[%c0_11, %c17, %c0_12] : memref<1x18x64xbf16, #tpu.memory_space<vmem>>, vector<1x1x64xbf16>
    %10 = vector.shape_cast %9 : vector<1x1x64xbf16> to vector<1x64xbf16>
    %11 = vector.shape_cast %8 : vector<1x64xbf16> to vector<1x1x64xbf16>
    tpu.vector_store %arg6[%c0_11, %c17, %c0_12], %11 {strides = array<i32>} : memref<1x18x64xbf16, #tpu.memory_space<vmem>>, vector<1x1x64xbf16>,
    %cst = arith.constant 0.000000e+00 : f32
    %12 = vector.broadcast %cst : f32 to vector<16x128xf32>
    %c0_13 = arith.constant 0 : index
    %c0_14 = arith.constant 0 : index
    %c0_15 = arith.constant 0 : index
    %13 = vector.load %arg6[%c0_13, %c0_14, %c0_15] : memref<1x18x64xbf16, #tpu.memory_space<vmem>>, vector<1x16x64xbf16>
    %14 = vector.shape_cast %13 : vector<1x16x64xbf16> to vector<16x64xbf16>
    %c0_16 = arith.constant 0 : index
    %c0_17 = arith.constant 0 : index
    %c0_18 = arith.constant 0 : index
    %15 = vector.load %arg2[%c0_16, %c0_17, %c0_18] : memref<3x64x128xbf16, #tpu.memory_space<vmem>>, vector<1x64x128xbf16>
    %16 = vector.shape_cast %15 : vector<1x64x128xbf16> to vector<64x128xbf16>
    %cst_19 = arith.constant dense<0.000000e+00> : vector<16x128xf32>
    %17 = tpu.matmul %14, %16, %cst_19 {dimension_numbers = #tpu.dot_dimension_numbers<[1], [0], [0], [1], [0, 0, 1, 1], [], []>} : vector<16x64xbf16>, vector<64x128xbf16>, vector<16x128xf32> -> vector<16x128xf32>
    %18 = arith.addf %12, %17 : vector<16x128xf32>
    %c0_20 = arith.constant 0 : index
    %c1_21 = arith.constant 1 : index
    %c0_22 = arith.constant 0 : index
    %19 = vector.load %arg6[%c0_20, %c1_21, %c0_22] : memref<1x18x64xbf16, #tpu.memory_space<vmem>>, vector<1x16x64xbf16>
    %20 = vector.shape_cast %19 : vector<1x16x64xbf16> to vector<16x64xbf16>
    %c1_23 = arith.constant 1 : index
    %c0_24 = arith.constant 0 : index
    %c0_25 = arith.constant 0 : index
    %21 = vector.load %arg2[%c1_23, %c0_24, %c0_25] : memref<3x64x128xbf16, #tpu.memory_space<vmem>>, vector<1x64x128xbf16>
    %22 = vector.shape_cast %21 : vector<1x64x128xbf16> to vector<64x128xbf16>
    %cst_26 = arith.constant dense<0.000000e+00> : vector<16x128xf32>
    %23 = tpu.matmul %20, %22, %cst_26 {dimension_numbers = #tpu.dot_dimension_numbers<[1], [0], [0], [1], [0, 0, 1, 1], [], []>} : vector<16x64xbf16>, vector<64x128xbf16>, vector<16x128xf32> -> vector<16x128xf32>
    %24 = arith.addf %18, %23 : vector<16x128xf32>
    %c0_27 = arith.constant 0 : index
    %c2_28 = arith.constant 2 : index
    %c0_29 = arith.constant 0 : index
    %25 = vector.load %arg6[%c0_27, %c2_28, %c0_29] : memref<1x18x64xbf16, #tpu.memory_space<vmem>>, vector<1x16x64xbf16>
    %26 = vector.shape_cast %25 : vector<1x16x64xbf16> to vector<16x64xbf16>
    %c2_30 = arith.constant 2 : index
    %c0_31 = arith.constant 0 : index
    %c0_32 = arith.constant 0 : index
    %27 = vector.load %arg2[%c2_30, %c0_31, %c0_32] : memref<3x64x128xbf16, #tpu.memory_space<vmem>>, vector<1x64x128xbf16>
    %28 = vector.shape_cast %27 : vector<1x64x128xbf16> to vector<64x128xbf16>
    %cst_33 = arith.constant dense<0.000000e+00> : vector<16x128xf32>
    %29 = tpu.matmul %26, %28, %cst_33 {dimension_numbers = #tpu.dot_dimension_numbers<[1], [0], [0], [1], [0, 0, 1, 1], [], []>} : vector<16x64xbf16>, vector<64x128xbf16>, vector<16x128xf32> -> vector<16x128xf32>
    %30 = arith.addf %24, %29 : vector<16x128xf32>
    %c0_34 = arith.constant 0 : index
    %c0_35 = arith.constant 0 : index
    %31 = vector.load %arg4[%c0_34, %c0_35] : memref<4x128xf32, #tpu.memory_space<vmem>>, vector<1x128xf32>
    %32 = vector.shape_cast %31 : vector<1x128xf32> to vector<128xf32>
    %33 = vector.shape_cast %32 : vector<128xf32> to vector<1x128xf32>
    %34 = vector.broadcast %33 : vector<1x128xf32> to vector<16x128xf32>
    %35 = arith.mulf %30, %34 : vector<16x128xf32>
    %c1_36 = arith.constant 1 : index
    %c0_37 = arith.constant 0 : index
    %36 = vector.load %arg4[%c1_36, %c0_37] : memref<4x128xf32, #tpu.memory_space<vmem>>, vector<1x128xf32>
    %37 = vector.shape_cast %36 : vector<1x128xf32> to vector<128xf32>
    %38 = vector.shape_cast %37 : vector<128xf32> to vector<1x128xf32>
    %39 = vector.broadcast %38 : vector<1x128xf32> to vector<16x128xf32>
    %40 = arith.addf %35, %39 : vector<16x128xf32>
    %cst_38 = arith.constant 0.000000e+00 : f32
    %41 = vector.broadcast %cst_38 : f32 to vector<16x128xf32>
    %42 = arith.cmpf oge, %40, %41 : vector<16x128xf32>
    %cst_39 = arith.constant 0.00999999977 : f32
    %43 = vector.broadcast %cst_39 : f32 to vector<16x128xf32>
    %44 = arith.mulf %43, %40 : vector<16x128xf32>
    %45 = arith.select %42, %40, %44 : vector<16x128xi1>, vector<16x128xf32>
    %46 = arith.truncf %45 : vector<16x128xf32> to vector<16x128xbf16>
    %47 = vector.shape_cast %46 : vector<16x128xbf16> to vector<1x16x128xbf16>
    %c0_40 = arith.constant 0 : index
    %c1_41 = arith.constant 1 : index
    %c0_42 = arith.constant 0 : index
    %48 = vector.load %arg7[%c0_40, %c1_41, %c0_42] : memref<1x18x128xbf16, #tpu.memory_space<vmem>>, vector<1x16x128xbf16>
    tpu.vector_store %arg7[%c0_40, %c1_41, %c0_42], %47 {strides = array<i32>} : memref<1x18x128xbf16, #tpu.memory_space<vmem>>, vector<1x16x128xbf16>,
    %c0_43 = arith.constant 0 : index
    %c2_44 = arith.constant 2 : index
    %c0_45 = arith.constant 0 : index
    %49 = vector.load %arg7[%c0_43, %c2_44, %c0_45] : memref<1x18x128xbf16, #tpu.memory_space<vmem>>, vector<1x1x128xbf16>
    %50 = vector.shape_cast %49 : vector<1x1x128xbf16> to vector<1x128xbf16>
    %c0_46 = arith.constant 0 : index
    %c0_47 = arith.constant 0 : index
    %c0_48 = arith.constant 0 : index
    %51 = vector.load %arg7[%c0_46, %c0_47, %c0_48] : memref<1x18x128xbf16, #tpu.memory_space<vmem>>, vector<1x1x128xbf16>
    %52 = vector.shape_cast %51 : vector<1x1x128xbf16> to vector<1x128xbf16>
    %53 = vector.shape_cast %50 : vector<1x128xbf16> to vector<1x1x128xbf16>
    tpu.vector_store %arg7[%c0_46, %c0_47, %c0_48], %53 {strides = array<i32>} : memref<1x18x128xbf16, #tpu.memory_space<vmem>>, vector<1x1x128xbf16>,
    %c0_49 = arith.constant 0 : index
    %c15_50 = arith.constant 15 : index
    %c0_51 = arith.constant 0 : index
    %54 = vector.load %arg7[%c0_49, %c15_50, %c0_51] : memref<1x18x128xbf16, #tpu.memory_space<vmem>>, vector<1x1x128xbf16>
    %55 = vector.shape_cast %54 : vector<1x1x128xbf16> to vector<1x128xbf16>
    %c0_52 = arith.constant 0 : index
    %c17_53 = arith.constant 17 : index
    %c0_54 = arith.constant 0 : index
    %56 = vector.load %arg7[%c0_52, %c17_53, %c0_54] : memref<1x18x128xbf16, #tpu.memory_space<vmem>>, vector<1x1x128xbf16>
    %57 = vector.shape_cast %56 : vector<1x1x128xbf16> to vector<1x128xbf16>
    %58 = vector.shape_cast %55 : vector<1x128xbf16> to vector<1x1x128xbf16>
    tpu.vector_store %arg7[%c0_52, %c17_53, %c0_54], %58 {strides = array<i32>} : memref<1x18x128xbf16, #tpu.memory_space<vmem>>, vector<1x1x128xbf16>,
    %cst_55 = arith.constant 0.000000e+00 : f32
    %59 = vector.broadcast %cst_55 : f32 to vector<16x128xf32>
    %c0_56 = arith.constant 0 : index
    %c0_57 = arith.constant 0 : index
    %c0_58 = arith.constant 0 : index
    %60 = vector.load %arg7[%c0_56, %c0_57, %c0_58] : memref<1x18x128xbf16, #tpu.memory_space<vmem>>, vector<1x16x128xbf16>
    %61 = vector.shape_cast %60 : vector<1x16x128xbf16> to vector<16x128xbf16>
    %c0_59 = arith.constant 0 : index
    %c0_60 = arith.constant 0 : index
    %c0_61 = arith.constant 0 : index
    %62 = vector.load %arg3[%c0_59, %c0_60, %c0_61] : memref<3x128x128xbf16, #tpu.memory_space<vmem>>, vector<1x128x128xbf16>
    %63 = vector.shape_cast %62 : vector<1x128x128xbf16> to vector<128x128xbf16>
    %cst_62 = arith.constant dense<0.000000e+00> : vector<16x128xf32>
    %64 = tpu.matmul %61, %63, %cst_62 {dimension_numbers = #tpu.dot_dimension_numbers<[1], [0], [0], [1], [0, 0, 1, 1], [], []>} : vector<16x128xbf16>, vector<128x128xbf16>, vector<16x128xf32> -> vector<16x128xf32>
    %65 = arith.addf %59, %64 : vector<16x128xf32>
    %c0_63 = arith.constant 0 : index
    %c1_64 = arith.constant 1 : index
    %c0_65 = arith.constant 0 : index
    %66 = vector.load %arg7[%c0_63, %c1_64, %c0_65] : memref<1x18x128xbf16, #tpu.memory_space<vmem>>, vector<1x16x128xbf16>
    %67 = vector.shape_cast %66 : vector<1x16x128xbf16> to vector<16x128xbf16>
    %c1_66 = arith.constant 1 : index
    %c0_67 = arith.constant 0 : index
    %c0_68 = arith.constant 0 : index
    %68 = vector.load %arg3[%c1_66, %c0_67, %c0_68] : memref<3x128x128xbf16, #tpu.memory_space<vmem>>, vector<1x128x128xbf16>
    %69 = vector.shape_cast %68 : vector<1x128x128xbf16> to vector<128x128xbf16>
    %cst_69 = arith.constant dense<0.000000e+00> : vector<16x128xf32>
    %70 = tpu.matmul %67, %69, %cst_69 {dimension_numbers = #tpu.dot_dimension_numbers<[1], [0], [0], [1], [0, 0, 1, 1], [], []>} : vector<16x128xbf16>, vector<128x128xbf16>, vector<16x128xf32> -> vector<16x128xf32>
    %71 = arith.addf %65, %70 : vector<16x128xf32>
    %c0_70 = arith.constant 0 : index
    %c2_71 = arith.constant 2 : index
    %c0_72 = arith.constant 0 : index
    %72 = vector.load %arg7[%c0_70, %c2_71, %c0_72] : memref<1x18x128xbf16, #tpu.memory_space<vmem>>, vector<1x16x128xbf16>
    %73 = vector.shape_cast %72 : vector<1x16x128xbf16> to vector<16x128xbf16>
    %c2_73 = arith.constant 2 : index
    %c0_74 = arith.constant 0 : index
    %c0_75 = arith.constant 0 : index
    %74 = vector.load %arg3[%c2_73, %c0_74, %c0_75] : memref<3x128x128xbf16, #tpu.memory_space<vmem>>, vector<1x128x128xbf16>
    %75 = vector.shape_cast %74 : vector<1x128x128xbf16> to vector<128x128xbf16>
    %cst_76 = arith.constant dense<0.000000e+00> : vector<16x128xf32>
    %76 = tpu.matmul %73, %75, %cst_76 {dimension_numbers = #tpu.dot_dimension_numbers<[1], [0], [0], [1], [0, 0, 1, 1], [], []>} : vector<16x128xbf16>, vector<128x128xbf16>, vector<16x128xf32> -> vector<16x128xf32>
    %77 = arith.addf %71, %76 : vector<16x128xf32>
    %c2_77 = arith.constant 2 : index
    %c0_78 = arith.constant 0 : index
    %78 = vector.load %arg4[%c2_77, %c0_78] : memref<4x128xf32, #tpu.memory_space<vmem>>, vector<1x128xf32>
    %79 = vector.shape_cast %78 : vector<1x128xf32> to vector<128xf32>
    %80 = vector.shape_cast %79 : vector<128xf32> to vector<1x128xf32>
    %81 = vector.broadcast %80 : vector<1x128xf32> to vector<16x128xf32>
    %82 = arith.mulf %77, %81 : vector<16x128xf32>
    %c3 = arith.constant 3 : index
    %c0_79 = arith.constant 0 : index
    %83 = vector.load %arg4[%c3, %c0_79] : memref<4x128xf32, #tpu.memory_space<vmem>>, vector<1x128xf32>
    %84 = vector.shape_cast %83 : vector<1x128xf32> to vector<128xf32>
    %85 = vector.shape_cast %84 : vector<128xf32> to vector<1x128xf32>
    %86 = vector.broadcast %85 : vector<1x128xf32> to vector<16x128xf32>
    %87 = arith.addf %82, %86 : vector<16x128xf32>
    %cst_80 = arith.constant 0.000000e+00 : f32
    %88 = vector.broadcast %cst_80 : f32 to vector<16x128xf32>
    %89 = arith.cmpf oge, %87, %88 : vector<16x128xf32>
    %cst_81 = arith.constant 0.00999999977 : f32
    %90 = vector.broadcast %cst_81 : f32 to vector<16x128xf32>
    %91 = arith.mulf %90, %87 : vector<16x128xf32>
    %92 = arith.select %89, %87, %91 : vector<16x128xi1>, vector<16x128xf32>
    %93 = vector.shape_cast %92 : vector<16x128xf32> to vector<1x16x128xf32>
    %94 = arith.truncf %93 : vector<1x16x128xf32> to vector<1x16x128xbf16>
    %c0_82 = arith.constant 0 : index
    %c0_83 = arith.constant 0 : index
    %c0_84 = arith.constant 0 : index
    %95 = vector.load %arg5[%c0_82, %c0_83, %c0_84] : memref<1x16x128xbf16, #tpu.memory_space<vmem>>, vector<1x16x128xbf16>
    tpu.vector_store %arg5[%c0_82, %c0_83, %c0_84], %94 {strides = array<i32>} : memref<1x16x128xbf16, #tpu.memory_space<vmem>>, vector<1x16x128xbf16>,
    return
  }
  func.func @transform_0(%arg0: i32) -> (i32, i32, i32) {
    %c0_i32 = arith.constant 0 : i32
    %c0_i32_0 = arith.constant 0 : i32
    %c0_i32_1 = arith.constant 0 : i32
    return %arg0, %c0_i32, %c0_i32_0 : i32, i32, i32
  }
  func.func @transform_1(%arg0: i32) -> (i32, i32, i32) {
    %c0_i32 = arith.constant 0 : i32
    %c0_i32_0 = arith.constant 0 : i32
    %c0_i32_1 = arith.constant 0 : i32
    %c0_i32_2 = arith.constant 0 : i32
    return %c0_i32, %c0_i32_0, %c0_i32_1 : i32, i32, i32
  }
  func.func @transform_2(%arg0: i32) -> (i32, i32, i32) {
    %c0_i32 = arith.constant 0 : i32
    %c0_i32_0 = arith.constant 0 : i32
    %c0_i32_1 = arith.constant 0 : i32
    %c0_i32_2 = arith.constant 0 : i32
    return %c0_i32, %c0_i32_0, %c0_i32_1 : i32, i32, i32
  }
  func.func @transform_3(%arg0: i32) -> (i32, i32) {
    %c0_i32 = arith.constant 0 : i32
    %c0_i32_0 = arith.constant 0 : i32
    %c0_i32_1 = arith.constant 0 : i32
    return %c0_i32, %c0_i32_0 : i32, i32
  }
  func.func @transform_4(%arg0: i32) -> (i32, i32, i32) {
    %c0_i32 = arith.constant 0 : i32
    %c0_i32_0 = arith.constant 0 : i32
    %c0_i32_1 = arith.constant 0 : i32
    return %arg0, %c0_i32, %c0_i32_0 : i32, i32, i32
  }
}

</mosaic_0001>

<llo_original>
// kernel: conv_block_forward_nhwc.1
$region0: #{conv_block_forward_nhwc.1}
  #allocation0 [shape = 'u32[]', space=smem, size = 0x4, offset = 0x4, fixed_abs, tag = 'smem constant byte address 0x4 - core index']
  #allocation1 [shape = 'u32[144,128]{1,0:T(1,128)}', space=vmem, size = 0x12000, scoped, tag = 'internal scratch']
  #allocation2 [shape = 'bf16[1,18,64]{2,1,0:T(8,128)(2,1)}', space=vmem, size = 0x1800, scoped, tag = 'scratch operand']
  #allocation3 [shape = 'bf16[1,18,128]{2,1,0:T(8,128)(2,1)}', space=vmem, size = 0x1800, scoped, tag = 'scratch operand']
  %s0 = inlined_call_operand.vmem [shape: bf16[2,16,64], index: 0, kind: input, shape index: {}]
  %s1 = inlined_call_operand.hbm [shape: bf16[3,64,128], index: 1, kind: input, shape index: {}]
  %s2 = inlined_call_operand.vmem [shape: bf16[3,128,128], index: 2, kind: input, shape index: {}]
  %s3 = inlined_call_operand.vmem [shape: f32[4,128], index: 3, kind: input, shape index: {}]
  %s4 = inlined_call_operand.vmem [shape: bf16[2,16,128], index: 4, kind: output, shape index: {}]
  %s5 = sld [smem:[#allocation0]]
  $region53: #{conv_block_forward_nhwc.1} parent=0
    _
  %s7 = ssub.s32 1, %s5
  %s8 = scalar_select 0, %s7, %s5
  $region1: #{conv_block_forward_nhwc.1} parent=0
    #allocation4 [shape = 'u8[49152]{0}', space=vmem, size = 0xc000, scoped, tag = 'input window, operand 1, single buffered']
    #allocation5 [shape = 's32[2]{0}', space=sflag, size = 0x8, scoped, tag = 'scoped memory for conv_block_forward_nhwc.1']
    %9 = vsyncpa [#allocation5], 0
    loop: start=0, step=1, limit=4
    $region2: #{conv_block_forward_nhwc.1} parent=1 // loop_pre_header
      _
    $region3: #{conv_block_forward_nhwc.1} parent=1 // loop_header
      %s11 = sphi 0, %s15
      %p12 = scmp.ge.s32.totalorder %s11, 4
      %s21 = sphi 0, %s23
      %s24 = sphi 0, %s21
      %s25 = sphi 0, %s24
      %s41 = sphi 0, %s25
      %s45 = sphi 0, %s45
      %s47 = sphi 0, %s45
      %s48 = sphi 0, %s47
      %s62 = sphi 0, %s48
      %s66 = sphi 0, %s66
      %s68 = sphi 0, %s66
      %s69 = sphi 0, %s68
      %s83 = sphi 0, %s69
      %s87 = sphi 0, %s87
      %s89 = sphi 0, %s87
      %s90 = sphi 0, %s89
      %s104 = sphi 0, %s90
      %s110 = sphi 0, %s112
      %s113 = sphi 0, %s110
      %s114 = sphi 0, %s113
      %s130 = sphi 0, %s114
    $region4: #{conv_block_forward_nhwc.1} parent=1 // loop_header_branch
      %14 = sbr.rel (%p12) target = $region8
    $region5: #{conv_block_forward_nhwc.1} parent=1 // loop_body
      %s16 = ssub.s32 %s11, 1
      %s17 = ssub.s32 %s11, 2
      %s18 = sadd.s32 %s11, 1
      %s19 = ssub.s32 %s11, %s18
      %p20 = scmp.eq.s32.totalorder %s19, 0
      %s22 = sadd.s32 %s21, 1
      %s23 = scalar_select %p20, %s21, %s22
      %p26 = pneg %p20
      %p27 = scmp.eq.s32.totalorder %s11, 1
      %p28 = por %p26, %p27
      %p29 = scmp.ne.s32.totalorder %s21, %s24
      %p30 = scmp.eq.s32.totalorder %s11, 0
      %p31 = por %p29, %p30
      %p32 = scmp.ne.s32.totalorder %s21, %s24
      %p33 = scmp.eq.s32.totalorder %s16, 1
      %p34 = por %p32, %p33
      %p35 = scmp.ne.s32.totalorder %s24, %s25
      %p36 = scmp.eq.s32.totalorder %s16, 0
      %p37 = por %p35, %p36
      %p38 = scmp.ne.s32.totalorder %s24, %s25
      %p39 = scmp.eq.s32.totalorder %s17, 1
      %p40 = por %p38, %p39
      %p42 = scmp.ne.s32.totalorder %s25, %s41
      %p43 = scmp.eq.s32.totalorder %s17, 0
      %p44 = por %p42, %p43
      %s46 = sadd.s32 %s45, 1
      %p49 = scmp.eq.s32.totalorder %s11, 1
      %p50 = scmp.ne.s32.totalorder %s45, %s47
      %p51 = scmp.eq.s32.totalorder %s11, 0
      %p52 = por %p50, %p51
      %p53 = scmp.ne.s32.totalorder %s45, %s47
      %p54 = scmp.eq.s32.totalorder %s16, 1
      %p55 = por %p53, %p54
      %p56 = scmp.ne.s32.totalorder %s47, %s48
      %p57 = scmp.eq.s32.totalorder %s16, 0
      %p58 = por %p56, %p57
      %p59 = scmp.ne.s32.totalorder %s47, %s48
      %p60 = scmp.eq.s32.totalorder %s17, 1
      %p61 = por %p59, %p60
      %p63 = scmp.ne.s32.totalorder %s48, %s62
      %p64 = scmp.eq.s32.totalorder %s17, 0
      %p65 = por %p63, %p64
      %s67 = sadd.s32 %s66, 1
      %p70 = scmp.eq.s32.totalorder %s11, 1
      %p71 = scmp.ne.s32.totalorder %s66, %s68
      %p72 = scmp.eq.s32.totalorder %s11, 0
      %p73 = por %p71, %p72
      %p74 = scmp.ne.s32.totalorder %s66, %s68
      %p75 = scmp.eq.s32.totalorder %s16, 1
      %p76 = por %p74, %p75
      %p77 = scmp.ne.s32.totalorder %s68, %s69
      %p78 = scmp.eq.s32.totalorder %s16, 0
      %p79 = por %p77, %p78
      %p80 = scmp.ne.s32.totalorder %s68, %s69
      %p81 = scmp.eq.s32.totalorder %s17, 1
      %p82 = por %p80, %p81
      %p84 = scmp.ne.s32.totalorder %s69, %s83
      %p85 = scmp.eq.s32.totalorder %s17, 0
      %p86 = por %p84, %p85
      %s88 = sadd.s32 %s87, 1
      %p91 = scmp.eq.s32.totalorder %s11, 1
      %p92 = scmp.ne.s32.totalorder %s87, %s89
      %p93 = scmp.eq.s32.totalorder %s11, 0
      %p94 = por %p92, %p93
      %p95 = scmp.ne.s32.totalorder %s87, %s89
      %p96 = scmp.eq.s32.totalorder %s16, 1
      %p97 = por %p95, %p96
      %p98 = scmp.ne.s32.totalorder %s89, %s90
      %p99 = scmp.eq.s32.totalorder %s16, 0
      %p100 = por %p98, %p99
      %p101 = scmp.ne.s32.totalorder %s89, %s90
      %p102 = scmp.eq.s32.totalorder %s17, 1
      %p103 = por %p101, %p102
      %p105 = scmp.ne.s32.totalorder %s90, %s104
      %p106 = scmp.eq.s32.totalorder %s17, 0
      %p107 = por %p105, %p106
      %s108 = ssub.s32 %s11, %s18
      %p109 = scmp.eq.s32.totalorder %s108, 0
      %s111 = sadd.s32 %s110, 1
      %s112 = scalar_select %p109, %s110, %s111
      %p115 = pneg %p109
      %p116 = scmp.eq.s32.totalorder %s11, 1
      %p117 = por %p115, %p116
      %p118 = scmp.ne.s32.totalorder %s110, %s113
      %p119 = scmp.eq.s32.totalorder %s11, 0
      %p120 = por %p118, %p119
      %p121 = scmp.ne.s32.totalorder %s110, %s113
      %p122 = scmp.eq.s32.totalorder %s16, 1
      %p123 = por %p121, %p122
      %p124 = scmp.ne.s32.totalorder %s113, %s114
      %p125 = scmp.eq.s32.totalorder %s16, 0
      %p126 = por %p124, %p125
      %p127 = scmp.ne.s32.totalorder %s113, %s114
      %p128 = scmp.eq.s32.totalorder %s17, 1
      %p129 = por %p127, %p128
      %p131 = scmp.ne.s32.totalorder %s114, %s130
      %p132 = scmp.eq.s32.totalorder %s17, 0
      %p133 = por %p131, %p132
      %p134 = scmp.le.s32.totalorder 1, %s11
      %p135 = scmp.lt.s32.totalorder %s11, 3
      %p136 = pnand %p134, %p135
      %p137 = pneg %p136
      // Predicated region
      $region9: #{conv_block_forward_nhwc.1} parent=5 // pred_check
        _
      $region10: #{conv_block_forward_nhwc.1} parent=5 // pred_check_branch
        %139 = sbr.rel (%p136) target = $region12
      $region11: #{conv_block_forward_nhwc.1} parent=5 // pred_region
        %s140 = ssub.s32 %s11, 1
        // Predicated region
        $region13: #{conv_block_forward_nhwc.1} parent=11 // pred_check
          %p141 = pneg %p58
        $region14: #{conv_block_forward_nhwc.1} parent=11 // pred_check_branch
          %143 = sbr.rel (%p141) target = $region16
        $region15: #{conv_block_forward_nhwc.1} parent=11 // pred_region
          %s145 = ssub.s32 1536, 1536
          %146 = vsyncadd [#allocation5], %s145
          %s147 = sshll.u32 [#allocation4], 4
          %s148 = int_to_ptr.vmem [resolvable:$true] %s147
          %153 = dma.hbm_to_vmem [thread:$0]  %s1, 1536, %s148, [#allocation5], 64, 64, 4
        $region16: #{conv_block_forward_nhwc.1} parent=11 // pred_fallthru
          _
        // Predicated region
        $region17: #{conv_block_forward_nhwc.1} parent=11 // pred_check
          %p154 = pneg %p79
        $region18: #{conv_block_forward_nhwc.1} parent=11 // pred_check_branch
          %156 = sbr.rel (%p154) target = $region20
        $region19: #{conv_block_forward_nhwc.1} parent=11 // pred_region
          _
        $region20: #{conv_block_forward_nhwc.1} parent=11 // pred_fallthru
          _
        // Predicated region
        $region21: #{conv_block_forward_nhwc.1} parent=11 // pred_check
          %p157 = pneg %p100
        $region22: #{conv_block_forward_nhwc.1} parent=11 // pred_check_branch
          %159 = sbr.rel (%p157) target = $region24
        $region23: #{conv_block_forward_nhwc.1} parent=11 // pred_region
          _
        $region24: #{conv_block_forward_nhwc.1} parent=11 // pred_fallthru
          _
      $region12: #{conv_block_forward_nhwc.1} parent=5 // pred_fallthru
        _
      %p160 = scmp.lt.s32.totalorder %s11, 2
      // Predicated region
      $region25: #{conv_block_forward_nhwc.1} parent=5 // pred_check
        %p161 = pneg %p160
      $region26: #{conv_block_forward_nhwc.1} parent=5 // pred_check_branch
        %163 = sbr.rel (%p161) target = $region28
      $region27: #{conv_block_forward_nhwc.1} parent=5 // pred_region
        // Predicated region
        $region29: #{conv_block_forward_nhwc.1} parent=27 // pred_check
          %p164 = pneg %p31
        $region30: #{conv_block_forward_nhwc.1} parent=27 // pred_check_branch
          %166 = sbr.rel (%p164) target = $region32
        $region31: #{conv_block_forward_nhwc.1} parent=27 // pred_region
          %p167 = scmp.lt.s32.totalorder %s11, 1
          %s168 = scalar_select %p167, %s11, 1
          %s169 = smul.addr %s168, 2
          %s170 = smul.addr %s169, 4
          %s171 = scalar_lea.vmem %s0, %s170
        $region32: #{conv_block_forward_nhwc.1} parent=27 // pred_fallthru
          _
      $region28: #{conv_block_forward_nhwc.1} parent=5 // pred_fallthru
        _
      %p172 = scmp.le.s32.totalorder 1, %s11
      %p173 = scmp.lt.s32.totalorder %s11, 3
      %p174 = pnand %p172, %p173
      %p175 = pneg %p174
      // Predicated region
      $region33: #{conv_block_forward_nhwc.1} parent=5 // pred_check
        _
      $region34: #{conv_block_forward_nhwc.1} parent=5 // pred_check_branch
        %177 = sbr.rel (%p174) target = $region36
      $region35: #{conv_block_forward_nhwc.1} parent=5 // pred_region
        %s178 = ssub.s32 %s11, 1
        // Predicated region
        $region37: #{conv_block_forward_nhwc.1} parent=35 // pred_check
          %p179 = pneg %p58
        $region38: #{conv_block_forward_nhwc.1} parent=35 // pred_check_branch
          %181 = sbr.rel (%p179) target = $region40
        $region39: #{conv_block_forward_nhwc.1} parent=35 // pred_region
          %182 = dma.done [#allocation5], 1536
        $region40: #{conv_block_forward_nhwc.1} parent=35 // pred_fallthru
          _
        %p183 = scmp.lt.s32.totalorder %s16, 1
        %s184 = scalar_select %p183, %s16, 1
        %s185 = smul.addr %s184, 2
        %s186 = smul.addr %s185, 4
        %s187 = scalar_lea.vmem %s0, %s186
        %p188 = pneg %p37
        %p189 = pneg %p34
        %p190 = pneg %p58
        %p191 = pneg %p55
        %p192 = pneg %p79
        %p193 = pneg %p76
        %p194 = pneg %p100
        %p195 = pneg %p97
        %p196 = pneg %p126
        %p197 = pneg %p123
        %p198 = scmp.lt.s32.totalorder %s16, 1
        %s199 = scalar_select %p198, %s16, 1
        %s200 = smul.addr %s199, 2
        %s201 = smul.addr %s200, 4
        %s202 = scalar_lea.vmem %s4, %s201
        %p203 = scmp.lt.s32.totalorder %s16, 1
        %s204 = scalar_select %p203, %s16, 1
        %s205 = smul.addr %s204, 2
        %s206 = smul.addr %s205, 4
        %s207 = scalar_lea.vmem %s0, %s206
        %p208 = scmp.lt.s32.totalorder %s16, 1
        %s209 = scalar_select %p208, %s16, 1
        %s210 = smul.addr %s209, 2
        %s211 = smul.addr %s210, 4
        %s212 = scalar_lea.vmem %s4, %s211
        %v214 = vld [vmem:[%s207] sm:$0xf]
        %v215 = vld [vmem:[%s207 + $0x4] sm:$0xf]
        %vm216 = vsmask.f32 256
        %vm217 = vsmask.f32 4368
        %vm218 = vmor %vm216, %vm217
        %v220 = vshrl.u32 %v214, 16
        %v222 = vrot.slane %v220, 7
        %v223 = vshll.u32 %v214, 16
        %v225 = vor.u32 %v222, %v223
        %v226 = vrot.slane %v222, 4
        %v228 = vshrl.u32 %v215, 16
        %v230 = vrot.slane %v228, 7
        %v231 = vshll.u32 %v215, 16
        %v233 = vor.u32 %v230, %v231
        %v234 = vsel %vm218, %v226, %v233
        %v235 = vrot.slane %v230, 4
        %vm239 = vcmask 519168
        %vm240 = vsmask.f32 7938
        %vm241 = vmand %vm239, %vm240
        %v242 = vld [vmem:[#allocation2] sm:$0xf]
        %v243 = vsel %vm241, %v225, %v242
        %244 = vst [vmem:[#allocation2] sm:$0xf] %v243
        %vm245 = vcmask 519168
        %246 = vst.msk [vmem:[#allocation2 + $0x4] sm:$0xf] %vm245, %v234
        %vm247 = vcmask 516096
        %vm248 = vmand %vm247, %vm216
        %v249 = vld [vmem:[#allocation2 + $0x8] sm:$0x1]
        %v250 = vsel %vm248, %v235, %v249
        %251 = vst [vmem:[#allocation2 + $0x8] sm:$0x1] %v250
        %v252 = vld [vmem:[#allocation2] sm:$0x2]
        %v254 = vrot.slane %v252, 5
        %v255 = vrot.slane %v254, 4
        %v257 = vld [vmem:[#allocation2] sm:$0x1]
        %v258 = vsel %vm248, %v255, %v257
        %259 = vst [vmem:[#allocation2] sm:$0x1] %v258
        %v260 = vld [vmem:[#allocation2 + $0x4] sm:$0x8]
        %v262 = vrot.slane %v260, 7
        %v263 = vrot.slane %v262, 4
        %vm265 = vmand %vm247, %vm240
        %v266 = vld [vmem:[#allocation2 + $0x8] sm:$0x1]
        %v267 = vsel %vm265, %v263, %v266
        %268 = vst [vmem:[#allocation2 + $0x8] sm:$0x1] %v267
        %v269 = vld [vmem:[#allocation2] sm:$0xf]
        %v270 = vld [vmem:[#allocation2 + $0x4] sm:$0xf]
        %v271 = vld [vmem:[#allocation4] sm:$0xf]
        %v272 = vld [vmem:[#allocation4 + $0x4] sm:$0xf]
        %v273 = vld [vmem:[#allocation4 + $0x8] sm:$0xf]
        %v274 = vld [vmem:[#allocation4 + $0xc] sm:$0xf]
        %v275 = vld [vmem:[#allocation4 + $0x10] sm:$0xf]
        %v276 = vld [vmem:[#allocation4 + $0x14] sm:$0xf]
        %v277 = vld [vmem:[#allocation4 + $0x18] sm:$0xf]
        %v278 = vld [vmem:[#allocation4 + $0x1c] sm:$0xf]
        %v279 = vld [vmem:[#allocation2 + $0x8] sm:$0x1]
        %s280 = scalar_lea.vmem [#allocation4], 32
        %v281 = vld [vmem:[%s280] sm:$0xf]
        %v282 = vld [vmem:[%s280 + $0x4] sm:$0xf]
        %v283 = vld [vmem:[%s280 + $0x8] sm:$0xf]
        %v284 = vld [vmem:[%s280 + $0xc] sm:$0xf]
        %v285 = vld [vmem:[%s280 + $0x10] sm:$0xf]
        %v286 = vld [vmem:[%s280 + $0x14] sm:$0xf]
        %v287 = vld [vmem:[%s280 + $0x18] sm:$0xf]
        %v288 = vld [vmem:[%s280 + $0x1c] sm:$0xf]
        %v292 = vunpack.c.l.b16 %v269
        %v293 = vunpack.c.l.b16 %v270
        %v294 = vunpack.c.l.b16 %v279
        %v295 = vpack.c.b16 %v293, %v292
        %v296 = vpack.c.b16 %v294, %v294
        %vm297 = vsmask.f32 7424
        %v299 = vshrl.u32 %v295, 16
        %v301 = vshll.u32 %v295, 16
        %v303 = vrot.slane %v301, 1
        %v304 = vor.u32 %v299, %v303
        %v306 = vshll.u32 %v296, 16
        %v308 = vrot.slane %v306, 1
        %v309 = vsel %vm297, %v304, %v308
        %v318 = vunpack.c.l.b16 %v281
        %v319 = vunpack.c.l.b16 %v282
        %v320 = vunpack.c.l.b16 %v283
        %v321 = vunpack.c.l.b16 %v284
        %v322 = vunpack.c.l.b16 %v285
        %v323 = vunpack.c.l.b16 %v286
        %v324 = vunpack.c.l.b16 %v287
        %v325 = vunpack.c.l.b16 %v288
        %v326 = vpack.c.b16 %v319, %v318
        %v327 = vpack.c.b16 %v321, %v320
        %v328 = vpack.c.b16 %v323, %v322
        %v329 = vpack.c.b16 %v325, %v324
        %vm334 = vcmask 523264
        %v336 = vsel %vm334, %v309, 0
        %338 = vmatprep.subr.bf16.mxu0 0
        %339 = vmatpush1.bf16.msra.mxu0 %v326
        %340 = vmatprep.subr.bf16.mxu0 0
        %341 = vmatpush1.bf16.msra.mxu0 %v327
        %342 = vmatprep.subr.bf16.mxu0 0
        %343 = vmatpush1.bf16.msra.mxu0 %v328
        %344 = vmatprep.subr.bf16.mxu0 0
        %345 = vmatpush1.bf16.msra.mxu0 %v329
        %346 = vmatprep.subr.bf16.mxu0 0
        %347 = vmatpush1.bf16.msra.mxu0 0
        %348 = vmatprep.subr.bf16.mxu0 0
        %349 = vmatpush1.bf16.msra.mxu0 0
        %350 = vmatprep.subr.bf16.mxu0 0
        %351 = vmatpush1.bf16.msra.mxu0 0
        %352 = vmatprep.subr.bf16.mxu0 0
        %353 = vmatpush1.bf16.msra.mxu0 0
        %354 = vmatprep.subr.bf16.mxu0 0
        %355 = vmatpush1.bf16.msra.mxu0 0
        %356 = vmatprep.subr.bf16.mxu0 0
        %357 = vmatpush1.bf16.msra.mxu0 0
        %358 = vmatprep.subr.bf16.mxu0 0
        %359 = vmatpush1.bf16.msra.mxu0 0
        %360 = vmatprep.subr.bf16.mxu0 0
        %361 = vmatpush1.bf16.msra.mxu0 0
        %362 = vmatprep.subr.bf16.mxu0 0
        %363 = vmatpush1.bf16.msra.mxu0 0
        %364 = vmatprep.subr.bf16.mxu0 0
        %365 = vmatpush1.bf16.msra.mxu0 0
        %366 = vmatprep.subr.bf16.mxu0 0
        %367 = vmatpush1.bf16.msra.mxu0 0
        %368 = vmatprep.subr.bf16.mxu0 0
        %369 = vmatpush1.bf16.msra.mxu0 0
        %370 = vmatprep.mubr.bf16.mxu0 0
        %371 = vmatmul.mubr.bf16.gmra.mrb[0].mxu0 %v336
        %v372 = vpop.f32.mrb[0].mxu0
        %v373 = vadd.f32 0.0, %v372
        %v374 = vpop.f32.mrb[0].mxu0
        %v375 = vpop.f32.mrb[0].mxu0
        %v376 = vadd.f32 0.0, %v375
        %v377 = vpop.f32.mrb[0].mxu0
        %378 = vdwg.mxu0
        %v387 = vunpack.c.l.b16 %v271
        %v388 = vunpack.c.l.b16 %v272
        %v389 = vunpack.c.l.b16 %v273
        %v390 = vunpack.c.l.b16 %v274
        %v391 = vunpack.c.l.b16 %v275
        %v392 = vunpack.c.l.b16 %v276
        %v393 = vunpack.c.l.b16 %v277
        %v394 = vunpack.c.l.b16 %v278
        %v395 = vpack.c.b16 %v388, %v387
        %v396 = vpack.c.b16 %v390, %v389
        %v397 = vpack.c.b16 %v392, %v391
        %v398 = vpack.c.b16 %v394, %v393
        %v403 = vsel %vm334, %v295, 0
        %405 = vmatprep.subr.bf16.mxu0 0
        %406 = vmatpush1.bf16.msra.mxu0 %v395
        %407 = vmatprep.subr.bf16.mxu0 0
        %408 = vmatpush1.bf16.msra.mxu0 %v396
        %409 = vmatprep.subr.bf16.mxu0 0
        %410 = vmatpush1.bf16.msra.mxu0 %v397
        %411 = vmatprep.subr.bf16.mxu0 0
        %412 = vmatpush1.bf16.msra.mxu0 %v398
        %413 = vmatprep.subr.bf16.mxu0 0
        %414 = vmatpush1.bf16.msra.mxu0 0
        %415 = vmatprep.subr.bf16.mxu0 0
        %416 = vmatpush1.bf16.msra.mxu0 0
        %417 = vmatprep.subr.bf16.mxu0 0
        %418 = vmatpush1.bf16.msra.mxu0 0
        %419 = vmatprep.subr.bf16.mxu0 0
        %420 = vmatpush1.bf16.msra.mxu0 0
        %421 = vmatprep.subr.bf16.mxu0 0
        %422 = vmatpush1.bf16.msra.mxu0 0
        %423 = vmatprep.subr.bf16.mxu0 0
        %424 = vmatpush1.bf16.msra.mxu0 0
        %425 = vmatprep.subr.bf16.mxu0 0
        %426 = vmatpush1.bf16.msra.mxu0 0
        %427 = vmatprep.subr.bf16.mxu0 0
        %428 = vmatpush1.bf16.msra.mxu0 0
        %429 = vmatprep.subr.bf16.mxu0 0
        %430 = vmatpush1.bf16.msra.mxu0 0
        %431 = vmatprep.subr.bf16.mxu0 0
        %432 = vmatpush1.bf16.msra.mxu0 0
        %433 = vmatprep.subr.bf16.mxu0 0
        %434 = vmatpush1.bf16.msra.mxu0 0
        %435 = vmatprep.subr.bf16.mxu0 0
        %436 = vmatpush1.bf16.msra.mxu0 0
        %437 = vmatprep.mubr.bf16.mxu0 0
        %438 = vmatmul.mubr.bf16.gmra.mrb[0].mxu0 %v403
        %v439 = vpop.f32.mrb[0].mxu0
        %v440 = vadd.f32 %v373, %v439
        %v441 = vpop.f32.mrb[0].mxu0
        %v442 = vpop.f32.mrb[0].mxu0
        %v443 = vadd.f32 %v376, %v442
        %v444 = vpop.f32.mrb[0].mxu0
        %445 = vdwg.mxu0
        %v446 = vld [vmem:[#allocation2] sm:$0xe]
        %s447 = scalar_lea.vmem [#allocation4], 64
        %v448 = vld [vmem:[%s447] sm:$0xf]
        %v449 = vld [vmem:[%s447 + $0x4] sm:$0xf]
        %v450 = vld [vmem:[%s447 + $0x8] sm:$0xf]
        %v451 = vld [vmem:[%s447 + $0xc] sm:$0xf]
        %v452 = vld [vmem:[%s447 + $0x10] sm:$0xf]
        %v453 = vld [vmem:[%s447 + $0x14] sm:$0xf]
        %v454 = vld [vmem:[%s447 + $0x18] sm:$0xf]
        %v455 = vld [vmem:[%s447 + $0x1c] sm:$0xf]
        %v457 = vunpack.c.l.b16 %v446
        %v458 = vpack.c.b16 %v293, %v457
        %vm459 = vcmask 1046528
        %v460 = vrot.slane %v458, 1
        %v461 = vrot.slane %v296, 1
        %v462 = vsel %vm459, %v460, %v461
        %v471 = vunpack.c.l.b16 %v448
        %v472 = vunpack.c.l.b16 %v449
        %v473 = vunpack.c.l.b16 %v450
        %v474 = vunpack.c.l.b16 %v451
        %v475 = vunpack.c.l.b16 %v452
        %v476 = vunpack.c.l.b16 %v453
        %v477 = vunpack.c.l.b16 %v454
        %v478 = vunpack.c.l.b16 %v455
        %v479 = vpack.c.b16 %v472, %v471
        %v480 = vpack.c.b16 %v474, %v473
        %v481 = vpack.c.b16 %v476, %v475
        %v482 = vpack.c.b16 %v478, %v477
        %v488 = vsel %vm334, %v462, 0
        %490 = vmatprep.subr.bf16.mxu0 0
        %491 = vmatpush1.bf16.msra.mxu0 %v479
        %492 = vmatprep.subr.bf16.mxu0 0
        %493 = vmatpush1.bf16.msra.mxu0 %v480
        %494 = vmatprep.subr.bf16.mxu0 0
        %495 = vmatpush1.bf16.msra.mxu0 %v481
        %496 = vmatprep.subr.bf16.mxu0 0
        %497 = vmatpush1.bf16.msra.mxu0 %v482
        %498 = vmatprep.subr.bf16.mxu0 0
        %499 = vmatpush1.bf16.msra.mxu0 0
        %500 = vmatprep.subr.bf16.mxu0 0
        %501 = vmatpush1.bf16.msra.mxu0 0
        %502 = vmatprep.subr.bf16.mxu0 0
        %503 = vmatpush1.bf16.msra.mxu0 0
        %504 = vmatprep.subr.bf16.mxu0 0
        %505 = vmatpush1.bf16.msra.mxu0 0
        %506 = vmatprep.subr.bf16.mxu0 0
        %507 = vmatpush1.bf16.msra.mxu0 0
        %508 = vmatprep.subr.bf16.mxu0 0
        %509 = vmatpush1.bf16.msra.mxu0 0
        %510 = vmatprep.subr.bf16.mxu0 0
        %511 = vmatpush1.bf16.msra.mxu0 0
        %512 = vmatprep.subr.bf16.mxu0 0
        %513 = vmatpush1.bf16.msra.mxu0 0
        %514 = vmatprep.subr.bf16.mxu0 0
        %515 = vmatpush1.bf16.msra.mxu0 0
        %516 = vmatprep.subr.bf16.mxu0 0
        %517 = vmatpush1.bf16.msra.mxu0 0
        %518 = vmatprep.subr.bf16.mxu0 0
        %519 = vmatpush1.bf16.msra.mxu0 0
        %520 = vmatprep.subr.bf16.mxu0 0
        %521 = vmatpush1.bf16.msra.mxu0 0
        %522 = vmatprep.mubr.bf16.mxu0 0
        %523 = vmatmul.mubr.bf16.gmra.mrb[0].mxu0 %v488
        %v524 = vpop.f32.mrb[0].mxu0
        %v525 = vadd.f32 0.0, %v524
        %v526 = vpop.f32.mrb[0].mxu0
        %v527 = vpop.f32.mrb[0].mxu0
        %v528 = vadd.f32 0.0, %v527
        %v529 = vpop.f32.mrb[0].mxu0
        %530 = vdwg.mxu0
        %v531 = vadd.f32 %v440, %v525
        %v532 = vadd.f32 %v443, %v528
        %v533 = vld [vmem:[%s3] sm:$0x1]
        %v534 = vlaneseq
        %v535 = vshrl.u32 %v534, 7
        %v536 = vsub.s32 0, %v535
        %v537 = vrot.slane %v533, %v536
        %v538 = vmul.f32 %v531, %v537
        %v539 = vmul.f32 %v532, %v537
        %v540 = vld [vmem:[%s3 + $0x1] sm:$0x1]
        %v541 = vlaneseq
        %v542 = vshrl.u32 %v541, 7
        %v543 = vsub.s32 0, %v542
        %v544 = vrot.slane %v540, %v543
        %v545 = vadd.f32 %v538, %v544
        %v546 = vadd.f32 %v539, %v544
        %vm547 = vcmp.ge.f32.partialorder %v545, 0.0
        %vm548 = vcmp.ge.f32.partialorder %v546, 0.0
        %v549 = vmul.f32 %v545, 0.01
        %v550 = vmul.f32 %v546, 0.01
        %v551 = vsel %vm547, %v545, %v549
        %v552 = vsel %vm548, %v546, %v550
        %v553 = vpack.c.bf16 %v552, %v551
        %v555 = vunpack.c.l.b16 %v553
        %v556 = vunpack.c.h.b16 %v553
        %v557 = vpack.c.b16 %v555, %v555
        %v558 = vpack.c.b16 %v556, %v556
        %v560 = vshrl.u32 %v557, 16
        %v562 = vrot.slane %v560, 7
        %v563 = vshll.u32 %v557, 16
        %v565 = vor.u32 %v562, %v563
        %v566 = vrot.slane %v562, 4
        %v568 = vshrl.u32 %v558, 16
        %v570 = vrot.slane %v568, 7
        %v571 = vshll.u32 %v558, 16
        %v573 = vor.u32 %v570, %v571
        %v574 = vsel %vm218, %v566, %v573
        %v575 = vrot.slane %v570, 4
        %vm579 = vcmask 1043456
        %vm580 = vmand %vm579, %vm240
        %v581 = vld [vmem:[#allocation3] sm:$0xf]
        %v582 = vsel %vm580, %v565, %v581
        %583 = vst [vmem:[#allocation3] sm:$0xf] %v582
        %584 = vst [vmem:[#allocation3 + $0x4] sm:$0xf] %v574
        %vm585 = vcmask 1040384
        %vm586 = vmand %vm585, %vm216
        %v587 = vld [vmem:[#allocation3 + $0x8] sm:$0x1]
        %v588 = vsel %vm586, %v575, %v587
        %589 = vst [vmem:[#allocation3 + $0x8] sm:$0x1] %v588
        %v590 = vld [vmem:[#allocation3] sm:$0x2]
        %v592 = vrot.slane %v590, 5
        %v593 = vrot.slane %v592, 4
        %v595 = vld [vmem:[#allocation3] sm:$0x1]
        %v596 = vsel %vm586, %v593, %v595
        %597 = vst [vmem:[#allocation3] sm:$0x1] %v596
        %v598 = vld [vmem:[#allocation3 + $0x4] sm:$0x8]
        %v600 = vrot.slane %v598, 7
        %v601 = vrot.slane %v600, 4
        %vm603 = vmand %vm585, %vm240
        %v604 = vld [vmem:[#allocation3 + $0x8] sm:$0x1]
        %v605 = vsel %vm603, %v601, %v604
        %606 = vst [vmem:[#allocation3 + $0x8] sm:$0x1] %v605
        %v607 = vld [vmem:[#allocation3] sm:$0xf]
        %v608 = vld [vmem:[#allocation3 + $0x4] sm:$0xf]
        %v609 = vld [vmem:[%s2] sm:$0xf]
        %v610 = vld [vmem:[%s2 + $0x4] sm:$0xf]
        %v611 = vld [vmem:[%s2 + $0x8] sm:$0xf]
        %v612 = vld [vmem:[%s2 + $0xc] sm:$0xf]
        %v613 = vld [vmem:[%s2 + $0x10] sm:$0xf]
        %v614 = vld [vmem:[%s2 + $0x14] sm:$0xf]
        %v615 = vld [vmem:[%s2 + $0x18] sm:$0xf]
        %v616 = vld [vmem:[%s2 + $0x1c] sm:$0xf]
        %v617 = vld [vmem:[%s2 + $0x20] sm:$0xf]
        %v618 = vld [vmem:[%s2 + $0x24] sm:$0xf]
        %v619 = vld [vmem:[%s2 + $0x28] sm:$0xf]
        %v620 = vld [vmem:[%s2 + $0x2c] sm:$0xf]
        %v621 = vld [vmem:[%s2 + $0x30] sm:$0xf]
        %v622 = vld [vmem:[%s2 + $0x34] sm:$0xf]
        %v623 = vld [vmem:[%s2 + $0x38] sm:$0xf]
        %v624 = vld [vmem:[%s2 + $0x3c] sm:$0xf]
        %v625 = vld [vmem:[#allocation3 + $0x8] sm:$0x1]
        %s626 = scalar_lea.vmem %s2, 64
        %v627 = vld [vmem:[%s626] sm:$0xf]
        %v628 = vld [vmem:[%s626 + $0x4] sm:$0xf]
        %v629 = vld [vmem:[%s626 + $0x8] sm:$0xf]
        %v630 = vld [vmem:[%s626 + $0xc] sm:$0xf]
        %v631 = vld [vmem:[%s626 + $0x10] sm:$0xf]
        %v632 = vld [vmem:[%s626 + $0x14] sm:$0xf]
        %v633 = vld [vmem:[%s626 + $0x18] sm:$0xf]
        %v634 = vld [vmem:[%s626 + $0x1c] sm:$0xf]
        %v635 = vld [vmem:[%s626 + $0x20] sm:$0xf]
        %v636 = vld [vmem:[%s626 + $0x24] sm:$0xf]
        %v637 = vld [vmem:[%s626 + $0x28] sm:$0xf]
        %v638 = vld [vmem:[%s626 + $0x2c] sm:$0xf]
        %v639 = vld [vmem:[%s626 + $0x30] sm:$0xf]
        %v640 = vld [vmem:[%s626 + $0x34] sm:$0xf]
        %v641 = vld [vmem:[%s626 + $0x38] sm:$0xf]
        %v642 = vld [vmem:[%s626 + $0x3c] sm:$0xf]
        %v646 = vunpack.c.l.b16 %v607
        %v647 = vunpack.c.l.b16 %v608
        %v648 = vunpack.c.l.b16 %v625
        %v649 = vpack.c.b16 %v647, %v646
        %v650 = vpack.c.b16 %v648, %v648
        %v652 = vshrl.u32 %v649, 16
        %v654 = vshll.u32 %v649, 16
        %v656 = vrot.slane %v654, 1
        %v657 = vor.u32 %v652, %v656
        %v659 = vshll.u32 %v650, 16
        %v661 = vrot.slane %v659, 1
        %v662 = vsel %vm297, %v657, %v661
        %v680 = vunpack.c.l.b16 %v627
        %v681 = vunpack.c.l.b16 %v628
        %v682 = vunpack.c.l.b16 %v629
        %v683 = vunpack.c.l.b16 %v630
        %v684 = vunpack.c.l.b16 %v631
        %v685 = vunpack.c.l.b16 %v632
        %v686 = vunpack.c.l.b16 %v633
        %v687 = vunpack.c.l.b16 %v634
        %v688 = vunpack.c.l.b16 %v635
        %v689 = vunpack.c.l.b16 %v636
        %v690 = vunpack.c.l.b16 %v637
        %v691 = vunpack.c.l.b16 %v638
        %v692 = vunpack.c.l.b16 %v639
        %v693 = vunpack.c.l.b16 %v640
        %v694 = vunpack.c.l.b16 %v641
        %v695 = vunpack.c.l.b16 %v642
        %v696 = vpack.c.b16 %v681, %v680
        %v697 = vpack.c.b16 %v683, %v682
        %v698 = vpack.c.b16 %v685, %v684
        %v699 = vpack.c.b16 %v687, %v686
        %v700 = vpack.c.b16 %v689, %v688
        %v701 = vpack.c.b16 %v691, %v690
        %v702 = vpack.c.b16 %v693, %v692
        %v703 = vpack.c.b16 %v695, %v694
        %712 = vmatprep.subr.bf16.mxu0 0
        %713 = vmatpush1.bf16.msra.mxu0 %v696
        %714 = vmatprep.subr.bf16.mxu0 0
        %715 = vmatpush1.bf16.msra.mxu0 %v697
        %716 = vmatprep.subr.bf16.mxu0 0
        %717 = vmatpush1.bf16.msra.mxu0 %v698
        %718 = vmatprep.subr.bf16.mxu0 0
        %719 = vmatpush1.bf16.msra.mxu0 %v699
        %720 = vmatprep.subr.bf16.mxu0 0
        %721 = vmatpush1.bf16.msra.mxu0 %v700
        %722 = vmatprep.subr.bf16.mxu0 0
        %723 = vmatpush1.bf16.msra.mxu0 %v701
        %724 = vmatprep.subr.bf16.mxu0 0
        %725 = vmatpush1.bf16.msra.mxu0 %v702
        %726 = vmatprep.subr.bf16.mxu0 0
        %727 = vmatpush1.bf16.msra.mxu0 %v703
        %728 = vmatprep.subr.bf16.mxu0 0
        %729 = vmatpush1.bf16.msra.mxu0 0
        %730 = vmatprep.subr.bf16.mxu0 0
        %731 = vmatpush1.bf16.msra.mxu0 0
        %732 = vmatprep.subr.bf16.mxu0 0
        %733 = vmatpush1.bf16.msra.mxu0 0
        %734 = vmatprep.subr.bf16.mxu0 0
        %735 = vmatpush1.bf16.msra.mxu0 0
        %736 = vmatprep.subr.bf16.mxu0 0
        %737 = vmatpush1.bf16.msra.mxu0 0
        %738 = vmatprep.subr.bf16.mxu0 0
        %739 = vmatpush1.bf16.msra.mxu0 0
        %740 = vmatprep.subr.bf16.mxu0 0
        %741 = vmatpush1.bf16.msra.mxu0 0
        %742 = vmatprep.subr.bf16.mxu0 0
        %743 = vmatpush1.bf16.msra.mxu0 0
        %744 = vmatprep.mubr.bf16.mxu0 0
        %745 = vmatmul.mubr.bf16.gmra.mrb[0].mxu0 %v662
        %v746 = vpop.f32.mrb[0].mxu0
        %v747 = vadd.f32 0.0, %v746
        %v748 = vpop.f32.mrb[0].mxu0
        %v749 = vpop.f32.mrb[0].mxu0
        %v750 = vadd.f32 0.0, %v749
        %v751 = vpop.f32.mrb[0].mxu0
        %752 = vdwg.mxu0
        %v770 = vunpack.c.l.b16 %v609
        %v771 = vunpack.c.l.b16 %v610
        %v772 = vunpack.c.l.b16 %v611
        %v773 = vunpack.c.l.b16 %v612
        %v774 = vunpack.c.l.b16 %v613
        %v775 = vunpack.c.l.b16 %v614
        %v776 = vunpack.c.l.b16 %v615
        %v777 = vunpack.c.l.b16 %v616
        %v778 = vunpack.c.l.b16 %v617
        %v779 = vunpack.c.l.b16 %v618
        %v780 = vunpack.c.l.b16 %v619
        %v781 = vunpack.c.l.b16 %v620
        %v782 = vunpack.c.l.b16 %v621
        %v783 = vunpack.c.l.b16 %v622
        %v784 = vunpack.c.l.b16 %v623
        %v785 = vunpack.c.l.b16 %v624
        %v786 = vpack.c.b16 %v771, %v770
        %v787 = vpack.c.b16 %v773, %v772
        %v788 = vpack.c.b16 %v775, %v774
        %v789 = vpack.c.b16 %v777, %v776
        %v790 = vpack.c.b16 %v779, %v778
        %v791 = vpack.c.b16 %v781, %v780
        %v792 = vpack.c.b16 %v783, %v782
        %v793 = vpack.c.b16 %v785, %v784
        %802 = vmatprep.subr.bf16.mxu0 0
        %803 = vmatpush1.bf16.msra.mxu0 %v786
        %804 = vmatprep.subr.bf16.mxu0 0
        %805 = vmatpush1.bf16.msra.mxu0 %v787
        %806 = vmatprep.subr.bf16.mxu0 0
        %807 = vmatpush1.bf16.msra.mxu0 %v788
        %808 = vmatprep.subr.bf16.mxu0 0
        %809 = vmatpush1.bf16.msra.mxu0 %v789
        %810 = vmatprep.subr.bf16.mxu0 0
        %811 = vmatpush1.bf16.msra.mxu0 %v790
        %812 = vmatprep.subr.bf16.mxu0 0
        %813 = vmatpush1.bf16.msra.mxu0 %v791
        %814 = vmatprep.subr.bf16.mxu0 0
        %815 = vmatpush1.bf16.msra.mxu0 %v792
        %816 = vmatprep.subr.bf16.mxu0 0
        %817 = vmatpush1.bf16.msra.mxu0 %v793
        %818 = vmatprep.subr.bf16.mxu0 0
        %819 = vmatpush1.bf16.msra.mxu0 0
        %820 = vmatprep.subr.bf16.mxu0 0
        %821 = vmatpush1.bf16.msra.mxu0 0
        %822 = vmatprep.subr.bf16.mxu0 0
        %823 = vmatpush1.bf16.msra.mxu0 0
        %824 = vmatprep.subr.bf16.mxu0 0
        %825 = vmatpush1.bf16.msra.mxu0 0
        %826 = vmatprep.subr.bf16.mxu0 0
        %827 = vmatpush1.bf16.msra.mxu0 0
        %828 = vmatprep.subr.bf16.mxu0 0
        %829 = vmatpush1.bf16.msra.mxu0 0
        %830 = vmatprep.subr.bf16.mxu0 0
        %831 = vmatpush1.bf16.msra.mxu0 0
        %832 = vmatprep.subr.bf16.mxu0 0
        %833 = vmatpush1.bf16.msra.mxu0 0
        %834 = vmatprep.mubr.bf16.mxu0 0
        %835 = vmatmul.mubr.bf16.gmra.mrb[0].mxu0 %v649
        %v836 = vpop.f32.mrb[0].mxu0
        %v837 = vadd.f32 %v747, %v836
        %v838 = vpop.f32.mrb[0].mxu0
        %v839 = vpop.f32.mrb[0].mxu0
        %v840 = vadd.f32 %v750, %v839
        %v841 = vpop.f32.mrb[0].mxu0
        %842 = vdwg.mxu0
        %v843 = vld [vmem:[#allocation3] sm:$0xe]
        %s844 = scalar_lea.vmem %s2, 128
        %v845 = vld [vmem:[%s844] sm:$0xf]
        %v846 = vld [vmem:[%s844 + $0x4] sm:$0xf]
        %v847 = vld [vmem:[%s844 + $0x8] sm:$0xf]
        %v848 = vld [vmem:[%s844 + $0xc] sm:$0xf]
        %v849 = vld [vmem:[%s844 + $0x10] sm:$0xf]
        %v850 = vld [vmem:[%s844 + $0x14] sm:$0xf]
        %v851 = vld [vmem:[%s844 + $0x18] sm:$0xf]
        %v852 = vld [vmem:[%s844 + $0x1c] sm:$0xf]
        %v853 = vld [vmem:[%s844 + $0x20] sm:$0xf]
        %v854 = vld [vmem:[%s844 + $0x24] sm:$0xf]
        %v855 = vld [vmem:[%s844 + $0x28] sm:$0xf]
        %v856 = vld [vmem:[%s844 + $0x2c] sm:$0xf]
        %v857 = vld [vmem:[%s844 + $0x30] sm:$0xf]
        %v858 = vld [vmem:[%s844 + $0x34] sm:$0xf]
        %v859 = vld [vmem:[%s844 + $0x38] sm:$0xf]
        %v860 = vld [vmem:[%s844 + $0x3c] sm:$0xf]
        %v862 = vunpack.c.l.b16 %v843
        %v863 = vpack.c.b16 %v647, %v862
        %v864 = vrot.slane %v863, 1
        %v865 = vrot.slane %v650, 1
        %v866 = vsel %vm459, %v864, %v865
        %v884 = vunpack.c.l.b16 %v845
        %v885 = vunpack.c.l.b16 %v846
        %v886 = vunpack.c.l.b16 %v847
        %v887 = vunpack.c.l.b16 %v848
        %v888 = vunpack.c.l.b16 %v849
        %v889 = vunpack.c.l.b16 %v850
        %v890 = vunpack.c.l.b16 %v851
        %v891 = vunpack.c.l.b16 %v852
        %v892 = vunpack.c.l.b16 %v853
        %v893 = vunpack.c.l.b16 %v854
        %v894 = vunpack.c.l.b16 %v855
        %v895 = vunpack.c.l.b16 %v856
        %v896 = vunpack.c.l.b16 %v857
        %v897 = vunpack.c.l.b16 %v858
        %v898 = vunpack.c.l.b16 %v859
        %v899 = vunpack.c.l.b16 %v860
        %v900 = vpack.c.b16 %v885, %v884
        %v901 = vpack.c.b16 %v887, %v886
        %v902 = vpack.c.b16 %v889, %v888
        %v903 = vpack.c.b16 %v891, %v890
        %v904 = vpack.c.b16 %v893, %v892
        %v905 = vpack.c.b16 %v895, %v894
        %v906 = vpack.c.b16 %v897, %v896
        %v907 = vpack.c.b16 %v899, %v898
        %916 = vmatprep.subr.bf16.mxu0 0
        %917 = vmatpush1.bf16.msra.mxu0 %v900
        %918 = vmatprep.subr.bf16.mxu0 0
        %919 = vmatpush1.bf16.msra.mxu0 %v901
        %920 = vmatprep.subr.bf16.mxu0 0
        %921 = vmatpush1.bf16.msra.mxu0 %v902
        %922 = vmatprep.subr.bf16.mxu0 0
        %923 = vmatpush1.bf16.msra.mxu0 %v903
        %924 = vmatprep.subr.bf16.mxu0 0
        %925 = vmatpush1.bf16.msra.mxu0 %v904
        %926 = vmatprep.subr.bf16.mxu0 0
        %927 = vmatpush1.bf16.msra.mxu0 %v905
        %928 = vmatprep.subr.bf16.mxu0 0
        %929 = vmatpush1.bf16.msra.mxu0 %v906
        %930 = vmatprep.subr.bf16.mxu0 0
        %931 = vmatpush1.bf16.msra.mxu0 %v907
        %932 = vmatprep.subr.bf16.mxu0 0
        %933 = vmatpush1.bf16.msra.mxu0 0
        %934 = vmatprep.subr.bf16.mxu0 0
        %935 = vmatpush1.bf16.msra.mxu0 0
        %936 = vmatprep.subr.bf16.mxu0 0
        %937 = vmatpush1.bf16.msra.mxu0 0
        %938 = vmatprep.subr.bf16.mxu0 0
        %939 = vmatpush1.bf16.msra.mxu0 0
        %940 = vmatprep.subr.bf16.mxu0 0
        %941 = vmatpush1.bf16.msra.mxu0 0
        %942 = vmatprep.subr.bf16.mxu0 0
        %943 = vmatpush1.bf16.msra.mxu0 0
        %944 = vmatprep.subr.bf16.mxu0 0
        %945 = vmatpush1.bf16.msra.mxu0 0
        %946 = vmatprep.subr.bf16.mxu0 0
        %947 = vmatpush1.bf16.msra.mxu0 0
        %948 = vmatprep.mubr.bf16.mxu0 0
        %949 = vmatmul.mubr.bf16.gmra.mrb[0].mxu0 %v866
        %v950 = vpop.f32.mrb[0].mxu0
        %v951 = vadd.f32 0.0, %v950
        %v952 = vpop.f32.mrb[0].mxu0
        %v953 = vpop.f32.mrb[0].mxu0
        %v954 = vadd.f32 0.0, %v953
        %v955 = vpop.f32.mrb[0].mxu0
        %956 = vdwg.mxu0
        %v957 = vadd.f32 %v837, %v951
        %v958 = vadd.f32 %v840, %v954
        %v959 = vld [vmem:[%s3 + $0x2] sm:$0x1]
        %v960 = vlaneseq
        %v961 = vshrl.u32 %v960, 7
        %v962 = vsub.s32 0, %v961
        %v963 = vrot.slane %v959, %v962
        %v964 = vmul.f32 %v957, %v963
        %v965 = vmul.f32 %v958, %v963
        %v966 = vld [vmem:[%s3 + $0x3] sm:$0x1]
        %v967 = vlaneseq
        %v968 = vshrl.u32 %v967, 7
        %v969 = vsub.s32 0, %v968
        %v970 = vrot.slane %v966, %v969
        %v971 = vadd.f32 %v964, %v970
        %v972 = vadd.f32 %v965, %v970
        %vm973 = vcmp.ge.f32.partialorder %v971, 0.0
        %vm974 = vcmp.ge.f32.partialorder %v972, 0.0
        %v975 = vmul.f32 %v971, 0.01
        %v976 = vmul.f32 %v972, 0.01
        %v977 = vsel %vm973, %v971, %v975
        %v978 = vsel %vm974, %v972, %v976
        %v979 = vpack.c.bf16 %v978, %v977
        %v981 = vunpack.c.l.b16 %v979
        %v982 = vunpack.c.h.b16 %v979
        %v983 = vpack.c.b16 %v981, %v981
        %v984 = vpack.c.b16 %v982, %v982
        %987 = vst [vmem:[%s212] sm:$0xf] %v983
        %988 = vst [vmem:[%s212 + $0x4] sm:$0xf] %v984
        %p989 = scmp.lt.s32.totalorder %s16, 1
        %s990 = scalar_select %p989, %s16, 1
        %s991 = smul.addr %s990, 2
        %s992 = smul.addr %s991, 4
        %s993 = scalar_lea.vmem %s4, %s992
        // Predicated region
        $region41: #{conv_block_forward_nhwc.1} parent=35 // pred_check
          %p994 = pneg %p123
        $region42: #{conv_block_forward_nhwc.1} parent=35 // pred_check_branch
          %996 = sbr.rel (%p994) target = $region44
        $region43: #{conv_block_forward_nhwc.1} parent=35 // pred_region
          _
        $region44: #{conv_block_forward_nhwc.1} parent=35 // pred_fallthru
          _
      $region36: #{conv_block_forward_nhwc.1} parent=5 // pred_fallthru
        _
      %p997 = scmp.le.s32.totalorder 2, %s11
      // Predicated region
      $region45: #{conv_block_forward_nhwc.1} parent=5 // pred_check
        %p998 = pneg %p997
      $region46: #{conv_block_forward_nhwc.1} parent=5 // pred_check_branch
        %1000 = sbr.rel (%p998) target = $region48
      $region47: #{conv_block_forward_nhwc.1} parent=5 // pred_region
        %s1001 = ssub.s32 %s11, 2
        // Predicated region
        $region49: #{conv_block_forward_nhwc.1} parent=47 // pred_check
          %p1002 = pneg %p129
        $region50: #{conv_block_forward_nhwc.1} parent=47 // pred_check_branch
          %1004 = sbr.rel (%p1002) target = $region52
        $region51: #{conv_block_forward_nhwc.1} parent=47 // pred_region
          %p1005 = scmp.lt.s32.totalorder %s17, 1
          %s1006 = scalar_select %p1005, %s17, 1
          %s1007 = smul.addr %s1006, 2
          %s1008 = smul.addr %s1007, 4
          %s1009 = scalar_lea.vmem %s4, %s1008
        $region52: #{conv_block_forward_nhwc.1} parent=47 // pred_fallthru
          _
      $region48: #{conv_block_forward_nhwc.1} parent=5 // pred_fallthru
        _
    $region6: #{conv_block_forward_nhwc.1} parent=1 // loop_footer
      %s15 = sadd.s32 1, %s11
    $region7: #{conv_block_forward_nhwc.1} parent=1 // loop_footer_branch
      %10 = sbr.rel target = $region3
    $region8: #{conv_block_forward_nhwc.1} parent=1 // loop_exit
      _
    %1010 = vsyncpa [#allocation5], 1
    %s1011 = scalar_lea.sflag [#allocation5], 1
    %1012 = vsyncpa %s1011, 1

</llo_original>
